<compile_context>
chip_gen: v7x
topology: tpu7x:2x2x1
jax: 0.10.0
libtpu: 0.0.40
codegen_flags: <defaults>
</compile_context>

<pallas_src>
import functools

import jax
import jax.numpy as jnp
from jax.experimental import pallas as pl
from jax.experimental.pallas import tpu as pltpu


def _defc_kernel(x_ref, w_ref, b_ref, o_ref):
    # x_ref: (tm, K)  input tile (f32 or bf16)
    # w_ref: (K, N)   weight, lane-dense layout, VMEM-resident across grid steps
    # b_ref: (1, N)   bias (f32), VMEM-resident
    # o_ref: (tm, N)  output tile
    acc = jnp.dot(x_ref[...], w_ref[...], preferred_element_type=jnp.float32)
    o_ref[...] = (acc + b_ref[...]).astype(o_ref.dtype)


def _choose_tm(M, tm_max):
    """Pick the M tile size.

    Returns (tm, pad_rows). Prefers: (a) a single full block for tiny M, (b) a multiple-of-8
    tile that divides M exactly (no pad / output-slice copies), (c) >= 2 grid tiles whenever
    M >= 16 so v7x's two TensorCores both get work. Falls back to padding only if no
    divisor exists.
    """
    tm_max = max(8, tm_max)
    if M >= 16:
        # Keep at least 2 grid tiles (megacore on v7x; near-zero effect on v5e/v6e).
        tm_max = min(tm_max, max(8, ((M // 2) // 8) * 8))
    if M <= tm_max:
        # One full block: block dim == array dim is always legal, even if M % 8 != 0.
        return M, 0
    t = (tm_max // 8) * 8
    while t >= 8:
        if M % t == 0:
            return t, 0
        t -= 8
    # Fallback: pad M up to a multiple of the largest multiple-of-8 tile.
    t = (tm_max // 8) * 8
    return t, pl.cdiv(M, t) * t - M


@functools.partial(
    jax.jit,
    static_argnames=("in_size", "out_size", "tm", "compute_dtype", "out_dtype"))
def chanelwise_defc(x, weight, bias, *, in_size, out_size, tm=4096,
                    compute_dtype=jnp.bfloat16, out_dtype=None):
    """ChanelWiseDeFC forward.

    x:      (B, C, out_size)
    weight: (in_size^2, out_size)   -- native PyTorch nn.Linear layout
    bias:   (in_size^2,)
    returns (B, C, in_size, in_size)
    """
    B, C, K = x.shape
    assert K == out_size
    N = in_size * in_size
    assert weight.shape == (N, K)
    assert bias.shape == (N,)
    M = B * C
    out_dtype = x.dtype if out_dtype is None else out_dtype

    a = x.reshape(M, K)
    w_kn = weight.T                     # one-time (K, N) lane-dense weight (32 KB class op)
    b2 = bias.reshape(1, N).astype(jnp.float32)

    # Optional narrow MXU inputs; accumulation stays f32 inside the kernel.
    if compute_dtype is not None:
        a = a.astype(compute_dtype)
        w_kn = w_kn.astype(compute_dtype)

    tm_eff, pad_rows = _choose_tm(M, tm)
    if pad_rows:
        a = jnp.pad(a, ((0, pad_rows), (0, 0)))
    m_total = M + pad_rows
    grid = (m_total // tm_eff,)

    x_item = jnp.dtype(a.dtype).itemsize
    w_item = jnp.dtype(w_kn.dtype).itemsize
    o_item = jnp.dtype(out_dtype).itemsize
    cost = pl.CostEstimate(
        flops=2 * m_total * N * K,
        transcendentals=0,
        bytes_accessed=(m_total * K * x_item + K * N * w_item
                        + m_total * N * o_item + N * 4),
    )

    out2d = pl.pallas_call(
        _defc_kernel,
        out_shape=jax.ShapeDtypeStruct((m_total, N), out_dtype),
        grid=grid,
        in_specs=[
            pl.BlockSpec((tm_eff, K), lambda i: (i, 0)),  # x tile marches along M
            pl.BlockSpec((K, N), lambda i: (0, 0)),       # weight resident in VMEM
            pl.BlockSpec((1, N), lambda i: (0, 0)),       # bias resident in VMEM
        ],
        out_specs=pl.BlockSpec((tm_eff, N), lambda i: (i, 0)),
        compiler_params=pltpu.CompilerParams(
            dimension_semantics=("parallel",)),           # independent tiles -> megacore on v7x
        cost_estimate=cost,
    )(a, w_kn, b2)

    if pad_rows:
        out2d = out2d[:M]
    return out2d.reshape(B, C, in_size, in_size)


if __name__ == "__main__":
    # Module config consistent with the forward: inSize=16, outSize=32
    in_size = 16
    out_size = 32
    B, C = 2, 4

    key = jax.random.PRNGKey(0)
    kx, kw, kb = jax.random.split(key, 3)

    # Deterministic param init (PyTorch Linear default: U(-1/sqrt(fan_in), 1/sqrt(fan_in)))
    bound = 1.0 / (out_size ** 0.5)
    weight = jax.random.uniform(kw, (in_size * in_size, out_size),
                                minval=-bound, maxval=bound, dtype=jnp.float32)
    bias = jax.random.uniform(kb, (in_size * in_size,),
                              minval=-bound, maxval=bound, dtype=jnp.float32)

    x = jax.random.normal(kx, (B, C, out_size), dtype=jnp.float32)

    # Reference in plain JAX (mirrors the PyTorch forward exactly).
    ref = (x.reshape(B * C, out_size) @ weight.T + bias).reshape(B, C, in_size, in_size)

    # 1) Exact f32 path.
    out_f32 = chanelwise_defc(x, weight, bias, in_size=in_size, out_size=out_size,
                              compute_dtype=None)
    out_f32 = jax.block_until_ready(out_f32)
    assert out_f32.shape == (B, C, in_size, in_size)
    assert jnp.allclose(out_f32, ref, atol=1e-5, rtol=1e-5)

    # 2) Default bf16-input path (f32 accumulate, f32 output) -- looser tolerance.
    out_bf = chanelwise_defc(x, weight, bias, in_size=in_size, out_size=out_size)
    out_bf = jax.block_until_ready(out_bf)
    assert out_bf.shape == (B, C, in_size, in_size)
    assert jnp.allclose(out_bf, ref, atol=5e-2, rtol=5e-2)

    print("KERNEL_OK")
</pallas_src>

<mosaic_0001>
module attributes {stable_mosaic.version = 11 : i64} {
  func.func @_defc_kernel(%arg0: i32, %arg1: memref<8x32xf32, #tpu.memory_space<vmem>>, %arg2: memref<32x256xf32, #tpu.memory_space<vmem>>, %arg3: memref<1x256xf32, #tpu.memory_space<vmem>>, %arg4: memref<8x256xf32, #tpu.memory_space<vmem>>) attributes {dimension_semantics = [#tpu.dimension_semantics<parallel>], iteration_bounds = array<i64: 1>, scalar_prefetch = 0 : i64, scratch_operands = 0 : i64, tpu.core_type = #tpu.core_type<tc>, window_params = [{transform_indices = @transform_0, window_bounds = array<i64: 8, 32>}, {pipeline_mode = #tpu.pipeline_mode<synchronous>, transform_indices = @transform_1, window_bounds = array<i64: 32, 256>}, {pipeline_mode = #tpu.pipeline_mode<synchronous>, transform_indices = @transform_2, window_bounds = array<i64: 1, 256>}, {transform_indices = @transform_3, window_bounds = array<i64: 8, 256>}]} {
    %c0 = arith.constant 0 : index
    %c0_0 = arith.constant 0 : index
    %0 = vector.load %arg1[%c0, %c0_0] : memref<8x32xf32, #tpu.memory_space<vmem>>, vector<8x32xf32>
    %c0_1 = arith.constant 0 : index
    %c0_2 = arith.constant 0 : index
    %1 = vector.load %arg2[%c0_1, %c0_2] : memref<32x256xf32, #tpu.memory_space<vmem>>, vector<32x256xf32>
    %cst = arith.constant dense<0.000000e+00> : vector<8x256xf32>
    %2 = tpu.matmul %0, %1, %cst {dimension_numbers = #tpu.dot_dimension_numbers<[1], [0], [0], [1], [0, 0, 1, 1], [], []>} : vector<8x32xf32>, vector<32x256xf32>, vector<8x256xf32> -> vector<8x256xf32>
    %c0_3 = arith.constant 0 : index
    %c0_4 = arith.constant 0 : index
    %3 = vector.load %arg3[%c0_3, %c0_4] : memref<1x256xf32, #tpu.memory_space<vmem>>, vector<1x256xf32>
    %4 = vector.broadcast %3 : vector<1x256xf32> to vector<8x256xf32>
    %5 = arith.addf %2, %4 : vector<8x256xf32>
    %c0_5 = arith.constant 0 : index
    %c0_6 = arith.constant 0 : index
    %6 = vector.load %arg4[%c0_5, %c0_6] : memref<8x256xf32, #tpu.memory_space<vmem>>, vector<8x256xf32>
    tpu.vector_store %arg4[%c0_5, %c0_6], %5 {strides = array<i32>} : memref<8x256xf32, #tpu.memory_space<vmem>>, vector<8x256xf32>,
    return
  }
  func.func @transform_0(%arg0: i32) -> (i32, i32) {
    %c0_i32 = arith.constant 0 : i32
    %c0_i32_0 = arith.constant 0 : i32
    return %arg0, %c0_i32 : i32, i32
  }
  func.func @transform_1(%arg0: i32) -> (i32, i32) {
    %c0_i32 = arith.constant 0 : i32
    %c0_i32_0 = arith.constant 0 : i32
    %c0_i32_1 = arith.constant 0 : i32
    return %c0_i32, %c0_i32_0 : i32, i32
  }
  func.func @transform_2(%arg0: i32) -> (i32, i32) {
    %c0_i32 = arith.constant 0 : i32
    %c0_i32_0 = arith.constant 0 : i32
    %c0_i32_1 = arith.constant 0 : i32
    return %c0_i32, %c0_i32_0 : i32, i32
  }
  func.func @transform_3(%arg0: i32) -> (i32, i32) {
    %c0_i32 = arith.constant 0 : i32
    %c0_i32_0 = arith.constant 0 : i32
    return %arg0, %c0_i32 : i32, i32
  }
}

</mosaic_0001>

<llo_original>
// kernel: chanelwise_defc.1
$region0: #{chanelwise_defc.1}
  #allocation0 [shape = 'u32[]', space=smem, size = 0x4, offset = 0x4, fixed_abs, tag = 'smem constant byte address 0x4 - core index']
  #allocation1 [shape = 'u32[144,128]{1,0:T(1,128)}', space=vmem, size = 0x12000, scoped, tag = 'internal scratch']
  %s0 = inlined_call_operand.vmem [shape: f32[8,32], index: 0, kind: input, shape index: {}]
  %s1 = inlined_call_operand.hbm [shape: f32[32,256], index: 1, kind: input, shape index: {}]
  %s2 = inlined_call_operand.vmem [shape: f32[1,256], index: 2, kind: input, shape index: {}]
  %s3 = inlined_call_operand.vmem [shape: f32[8,256], index: 3, kind: output, shape index: {}]
  %s4 = sld [smem:[#allocation0]]
  $region26: #{chanelwise_defc.1} parent=0
    _
  %s6 = ssub.s32 1, %s4
  %s7 = scalar_select 0, %s6, %s4
  $region1: #{chanelwise_defc.1} parent=0
    #allocation2 [shape = 'u8[32768]{0}', space=vmem, size = 0x8000, scoped, tag = 'input window, operand 1, single buffered']
    #allocation3 [shape = 's32[1]{0}', space=sflag, size = 0x4, scoped, tag = 'scoped memory for chanelwise_defc.1']
    %8 = vsyncpa [#allocation3], 0
    // Predicated region
    $region2: #{chanelwise_defc.1} parent=1 // pred_check
      _
    $region3: #{chanelwise_defc.1} parent=1 // pred_check_branch
      %10 = sbr.rel (0) target = $region5
    $region4: #{chanelwise_defc.1} parent=1 // pred_region
      _
    $region5: #{chanelwise_defc.1} parent=1 // pred_fallthru
      _
    // Predicated region
    $region6: #{chanelwise_defc.1} parent=1 // pred_check
      _
    $region7: #{chanelwise_defc.1} parent=1 // pred_check_branch
      %12 = sbr.rel (0) target = $region9
    $region8: #{chanelwise_defc.1} parent=1 // pred_region
      %s14 = ssub.s32 1024, 1024
      %15 = vsyncadd [#allocation3], %s14
      %s16 = sshll.u32 [#allocation2], 4
      %s17 = int_to_ptr.vmem [resolvable:$true] %s16
      %22 = dma.hbm_to_vmem [thread:$0]  %s1, 1024, %s17, [#allocation3], 256, 256, 16
    $region9: #{chanelwise_defc.1} parent=1 // pred_fallthru
      _
    // Predicated region
    $region10: #{chanelwise_defc.1} parent=1 // pred_check
      _
    $region11: #{chanelwise_defc.1} parent=1 // pred_check_branch
      %24 = sbr.rel (0) target = $region13
    $region12: #{chanelwise_defc.1} parent=1 // pred_region
      _
    $region13: #{chanelwise_defc.1} parent=1 // pred_fallthru
      _
    // Predicated region
    $region14: #{chanelwise_defc.1} parent=1 // pred_check
      _
    $region15: #{chanelwise_defc.1} parent=1 // pred_check_branch
      %26 = sbr.rel (0) target = $region17
    $region16: #{chanelwise_defc.1} parent=1 // pred_region
      %27 = dma.done [#allocation3], 1024
    $region17: #{chanelwise_defc.1} parent=1 // pred_fallthru
      _
    %v28 = vld [vmem:[%s0] sm:$0xff]
    %v29 = vld [vmem:[#allocation2] sm:$0xff]
    %v30 = vld [vmem:[#allocation2 + $0x8] sm:$0xff]
    %v31 = vld [vmem:[#allocation2 + $0x10] sm:$0xff]
    %v32 = vld [vmem:[#allocation2 + $0x18] sm:$0xff]
    %v33 = vld [vmem:[#allocation2 + $0x20] sm:$0xff]
    %v34 = vld [vmem:[#allocation2 + $0x28] sm:$0xff]
    %v35 = vld [vmem:[#allocation2 + $0x30] sm:$0xff]
    %v36 = vld [vmem:[#allocation2 + $0x38] sm:$0xff]
    %v37 = vld [vmem:[%s2] sm:$0x3]
    %v39 = vlaneseq
    %v40 = vshrl.u32 %v39, 7
    %v41 = vsub.s32 0, %v40
    %v42 = vrot.slane %v37, %v41
    %v43 = vlaneseq
    %v44 = vshrl.u32 %v43, 7
    %v45 = vsub.s32 1, %v44
    %v46 = vrot.slane %v37, %v45
    %vm49 = vcmask 261120
    %v51 = vsel %vm49, %v28, 0
    %53 = vmatprep.subr.mxu0 %v30
    %54 = vmatpush1.msra.mxu0 %v29
    %55 = vmatprep.subr.mxu0 %v32
    %56 = vmatpush1.msra.mxu0 %v31
    %57 = vmatprep.subr.mxu0 %v34
    %58 = vmatpush1.msra.mxu0 %v33
    %59 = vmatprep.subr.mxu0 %v36
    %60 = vmatpush1.msra.mxu0 %v35
    %61 = vmatprep.subr.mxu0 0.0
    %62 = vmatpush1.msra.mxu0 0.0
    %63 = vmatprep.subr.mxu0 0.0
    %64 = vmatpush1.msra.mxu0 0.0
    %65 = vmatprep.subr.mxu0 0.0
    %66 = vmatpush1.msra.mxu0 0.0
    %67 = vmatprep.subr.mxu0 0.0
    %68 = vmatpush1.msra.mxu0 0.0
    %69 = vmatprep.subr.mxu0 0.0
    %70 = vmatpush1.msra.mxu0 0.0
    %71 = vmatprep.subr.mxu0 0.0
    %72 = vmatpush1.msra.mxu0 0.0
    %73 = vmatprep.subr.mxu0 0.0
    %74 = vmatpush1.msra.mxu0 0.0
    %75 = vmatprep.subr.mxu0 0.0
    %76 = vmatpush1.msra.mxu0 0.0
    %77 = vmatprep.subr.mxu0 0.0
    %78 = vmatpush1.msra.mxu0 0.0
    %79 = vmatprep.subr.mxu0 0.0
    %80 = vmatpush1.msra.mxu0 0.0
    %81 = vmatprep.subr.mxu0 0.0
    %82 = vmatpush1.msra.mxu0 0.0
    %83 = vmatprep.subr.mxu0 0.0
    %84 = vmatpush1.msra.mxu0 0.0
    %85 = vmatprep.subr.mxu0 0.0
    %86 = vmatpush1.msra.mxu0 0.0
    %87 = vmatprep.subr.mxu0 0.0
    %88 = vmatpush1.msra.mxu0 0.0
    %89 = vmatprep.subr.mxu0 0.0
    %90 = vmatpush1.msra.mxu0 0.0
    %91 = vmatprep.subr.mxu0 0.0
    %92 = vmatpush1.msra.mxu0 0.0
    %93 = vmatprep.subr.mxu0 0.0
    %94 = vmatpush1.msra.mxu0 0.0
    %95 = vmatprep.subr.mxu0 0.0
    %96 = vmatpush1.msra.mxu0 0.0
    %97 = vmatprep.subr.mxu0 0.0
    %98 = vmatpush1.msra.mxu0 0.0
    %99 = vmatprep.subr.mxu0 0.0
    %100 = vmatpush1.msra.mxu0 0.0
    %101 = vmatprep.subr.mxu0 0.0
    %102 = vmatpush1.msra.mxu0 0.0
    %103 = vmatprep.subr.mxu0 0.0
    %104 = vmatpush1.msra.mxu0 0.0
    %105 = vmatprep.subr.mxu0 0.0
    %106 = vmatpush1.msra.mxu0 0.0
    %107 = vmatprep.subr.mxu0 0.0
    %108 = vmatpush1.msra.mxu0 0.0
    %109 = vmatprep.subr.mxu0 0.0
    %110 = vmatpush1.msra.mxu0 0.0
    %111 = vmatprep.subr.mxu0 0.0
    %112 = vmatpush1.msra.mxu0 0.0
    %113 = vmatprep.subr.mxu0 0.0
    %114 = vmatpush1.msra.mxu0 0.0
    %115 = vmatprep.subr.mxu0 0.0
    %116 = vmatpush1.msra.mxu0 0.0
    %117 = vmatprep.mubr.f32.mxu0 0.0
    %118 = vmatmul.mubr.f32.gmra.mrb[0].mxu0 %v51
    %v119 = vpop.f32.mrb[0].mxu0
    %v120 = vadd.f32 %v42, %v119
    %v121 = vpop.f32.mrb[0].mxu0
    %v122 = vadd.f32 %v46, %v121
    %123 = vdwg.mxu0
    %124 = vst [vmem:[%s3] sm:$0xff] %v120
    %125 = vst [vmem:[%s3 + $0x8] sm:$0xff] %v122
    // Predicated region
    $region18: #{chanelwise_defc.1} parent=1 // pred_check
      _
    $region19: #{chanelwise_defc.1} parent=1 // pred_check_branch
      %127 = sbr.rel (0) target = $region21
    $region20: #{chanelwise_defc.1} parent=1 // pred_region
      _
    $region21: #{chanelwise_defc.1} parent=1 // pred_fallthru
      _
    // Predicated region
    $region22: #{chanelwise_defc.1} parent=1 // pred_check
      _
    $region23: #{chanelwise_defc.1} parent=1 // pred_check_branch
      %129 = sbr.rel (0) target = $region25
    $region24: #{chanelwise_defc.1} parent=1 // pred_region
      _
    $region25: #{chanelwise_defc.1} parent=1 // pred_fallthru
      _
    %130 = vsyncpa [#allocation3], 1

</llo_original>
